<compile_context>
chip_gen: v5e
topology: v5e:2x2
jax: 0.10.0
libtpu: 0.0.40
codegen_flags: <defaults>
</compile_context>

<pallas_src>
import numpy as np
import jax
import jax.numpy as jnp
from jax import lax
from jax.experimental import pallas as pl
from jax.experimental.pallas import tpu as pltpu


NEG_PAD = -1e30  # finite "-inf" sentinel: excluded taps / padded lanes never produce NaN/Inf


def _round_up(a, b):
    return ((a + b - 1) // b) * b


def _reduction_kernel(xcol_ref, pen_ref, w_ref, bias_ref, out_ref):
    # xcol_ref: (18*C, LT) bf16  im2col conv taps (9 m2 taps then 9 m3 taps, channel-minor)
    # pen_ref : (9, LT)    f32   maxpool border penalty (0 valid tap, NEG_PAD out-of-bounds)
    # w_ref   : (C, 18*C)  bf16  consolidated weights with BN scale folded
    # bias_ref: (C, 1)     f32   folded BN bias for concat([m2, m3])
    # out_ref : (C, LT)          lane-dense output block
    C = out_ref.shape[0]

    # Both conv branches in one MXU matmul (f32 accumulation), bias added once.
    conv = jnp.dot(w_ref[...], xcol_ref[...], preferred_element_type=jnp.float32)
    conv = conv + bias_ref[...]

    # MaxPool2d(3, 2, 1) reuses the m2 conv taps (same sampling grid, zero-padded borders);
    # the additive penalty forces zero-padded / lane-padded taps to NEG_PAD so the max
    # matches PyTorch's -inf padding semantics.  Slices start at multiples of C (=32,
    # bf16-tile aligned), so these are plain aligned VMEM loads, no relayout copies.
    pool = xcol_ref[pl.ds(0, C), :] + pen_ref[pl.ds(0, 1), :]          # promotes to f32
    for t in range(1, 9):                                              # unrolled running max
        pool = jnp.maximum(pool,
                           xcol_ref[pl.ds(t * C, C), :] + pen_ref[pl.ds(t, 1), :])

    out_ref[...] = jnp.maximum(conv + pool, 0.0).astype(out_ref.dtype)


def reduction_forward(x, w_all, bias, *, lane_block=2048):
    N, C, H, W = x.shape
    OH = (H + 2 - 3) // 2 + 1
    OW = (W + 2 - 3) // 2 + 1
    L = N * OH * OW

    # ---- lane blocking: lanes = N*OH*OW --------------------------------------------------
    # lane_block=2048 keeps the double-buffered working set ~5 MiB at C=32 (fits the 16 MiB
    # v5e scoped default with headroom); raise toward 4096 on v6e/v7x if profiling says so,
    # but never so far that the grid collapses below 2 blocks (v7x megacore).
    LT = min(_round_up(lane_block, 128), _round_up(L, 128))
    if L > 128 and -(-L // LT) < 2:
        LT = _round_up(-(-L // 2), 128)        # keep >= 2 parallel lane blocks when possible
    n_blk = -(-L // LT)
    Lp = n_blk * LT

    # ---- im2col in plain JAX (layout glue only) ------------------------------------------
    # One CNHW transpose of x, cast to bf16 BEFORE building taps: the 18*C*L tap tensor is
    # built directly in its final (tap, C, N, OH, OW) order and never exists in f32.
    xt = jnp.transpose(x, (1, 0, 2, 3)).astype(jnp.bfloat16)            # (C, N, H, W)
    xp1 = jnp.pad(xt, ((0, 0), (0, 0), (1, 1), (1, 1)))                 # zeros: m2 (pad 1)
    xp2 = jnp.pad(xt, ((0, 0), (0, 0), (2, 2), (2, 2)))                 # zeros: m3 (pad 2)

    taps = []
    for ky in range(3):
        for kx in range(3):   # m2: stride 2, dilation 1 (same grid as MaxPool2d(3,2,1))
            taps.append(xp1[:, :, ky:ky + 2 * OH:2, kx:kx + 2 * OW:2])
    for ky in range(3):
        for kx in range(3):   # m3: stride 2, dilation 2
            taps.append(xp2[:, :, 2 * ky:2 * ky + 2 * OH:2, 2 * kx:2 * kx + 2 * OW:2])
    xcol = jnp.stack(taps, 0).reshape(18 * C, L)                        # rows = tap*C + c

    # maxpool border penalty: tap (ky,kx) at output (oh,ow) samples input (2*oh+ky-1, 2*ow+kx-1)
    rows = 2 * jnp.arange(OH)[None, :] + jnp.arange(3)[:, None] - 1     # (3, OH)
    cols = 2 * jnp.arange(OW)[None, :] + jnp.arange(3)[:, None] - 1     # (3, OW)
    valid = ((rows >= 0) & (rows < H))[:, None, :, None] & \
            ((cols >= 0) & (cols < W))[None, :, None, :]                # (ky, kx, oh, ow)
    valid = jnp.tile(valid.reshape(9, OH * OW), (1, N))                 # lanes are n-major
    pen = jnp.where(valid, 0.0, NEG_PAD).astype(jnp.float32)            # (9, L)

    if Lp != L:
        xcol = jnp.pad(xcol, ((0, 0), (0, Lp - L)))                                   # zero conv taps
        pen = jnp.pad(pen, ((0, 0), (0, Lp - L)), constant_values=NEG_PAD)            # dead pool lanes

    out_bytes = jnp.dtype(x.dtype).itemsize
    cost = pl.CostEstimate(
        flops=2 * C * (18 * C) * Lp,
        transcendentals=0,
        bytes_accessed=int(xcol.size * 2 + pen.size * 4 + w_all.size * 2
                           + bias.size * 4 + C * Lp * out_bytes),
    )

    out = pl.pallas_call(
        _reduction_kernel,
        out_shape=jax.ShapeDtypeStruct((C, Lp), x.dtype),
        grid=(n_blk,),
        in_specs=[
            pl.BlockSpec((18 * C, LT), lambda j: (0, j)),
            pl.BlockSpec((9, LT), lambda j: (0, j)),
            pl.BlockSpec((C, 18 * C), lambda j: (0, 0)),   # weights resident across lane blocks
            pl.BlockSpec((C, 1), lambda j: (0, 0)),
        ],
        out_specs=pl.BlockSpec((C, LT), lambda j: (0, j)),
        compiler_params=pltpu.CompilerParams(
            dimension_semantics=("parallel",),             # independent lane blocks -> megacore
            vmem_limit_bytes=32 * 1024 * 1024,             # explicit; ~5 MiB used at LT=2048, C=32
        ),
        cost_estimate=cost,
        # TODO(synk): on v7x only, consider fp8 xcol/w_all (f32 acc) to halve the dominant stream.
    )(xcol, pen, w_all, bias)

    return out[:, :L].reshape(C, N, OH, OW).transpose(1, 0, 2, 3)


def dense_tap_weights(w, groups):
    """(c_out, cin_per_group, 3, 3) grouped-conv weight -> (9, c_out, c_in) block-diagonal dense."""
    c_out, cin_pg, kh, kw = w.shape
    cout_pg = c_out // groups
    cin = groups * cin_pg
    d = np.zeros((kh * kw, c_out, cin), np.float32)
    for co in range(c_out):
        g = co // cout_pg
        for ic in range(cin_pg):
            for ky in range(kh):
                for kx in range(kw):
                    d[ky * kw + kx, co, g * cin_pg + ic] = w[co, ic, ky, kx]
    return d


def build_folded_weights(w2, w3, scale2, biasv2, scale3, biasv3, groups):
    """Build the consolidated (C, 18*C) bf16 weight (BN scale folded) and (C, 1) f32 bias."""
    c_ = w2.shape[0]
    C = 2 * c_
    w2d = dense_tap_weights(np.asarray(w2), groups) * np.asarray(scale2)[None, :, None]  # (9, c_, C)
    w3d = dense_tap_weights(np.asarray(w3), groups) * np.asarray(scale3)[None, :, None]  # (9, c_, C)
    w_all = np.zeros((C, 18 * C), np.float32)
    w_all[:c_, :9 * C] = w2d.transpose(1, 0, 2).reshape(c_, 9 * C)
    w_all[c_:, 9 * C:] = w3d.transpose(1, 0, 2).reshape(c_, 9 * C)
    # TODO(synk): if C grows well beyond 32 the block-diagonal zeros inflate K (groups/cin_pg x)
    # and M=C underfills the MXU; switch to two branch matmuls / per-group matmuls then.
    bias = np.concatenate([np.asarray(biasv2), np.asarray(biasv3)]).reshape(C, 1).astype(np.float32)
    return jnp.asarray(w_all, jnp.bfloat16), jnp.asarray(bias, jnp.float32)


def reference(x, w2, w3, scale2, biasv2, scale3, biasv3, groups):
    dn = lax.conv_dimension_numbers(x.shape, w2.shape, ('NCHW', 'OIHW', 'NCHW'))
    y2 = lax.conv_general_dilated(x, w2, (2, 2), [(1, 1), (1, 1)],
                                  dimension_numbers=dn, feature_group_count=groups,
                                  precision=lax.Precision.HIGHEST)
    y2 = y2 * scale2[None, :, None, None] + biasv2[None, :, None, None]
    y3 = lax.conv_general_dilated(x, w3, (2, 2), [(2, 2), (2, 2)], rhs_dilation=(2, 2),
                                  dimension_numbers=dn, feature_group_count=groups,
                                  precision=lax.Precision.HIGHEST)
    y3 = y3 * scale3[None, :, None, None] + biasv3[None, :, None, None]
    pool = lax.reduce_window(x, -jnp.inf, lax.max, (1, 1, 3, 3), (1, 1, 2, 2),
                             [(0, 0), (0, 0), (1, 1), (1, 1)])
    return jnp.maximum(jnp.concatenate([y2, y3], axis=1) + pool, 0.0)


if __name__ == "__main__":
    # groups=16, c_ = in_c/2 => in_c must be a multiple of 32; N*OH*OW = 128 lanes exactly.
    N, C, H, W = 2, 32, 16, 16
    groups = 16
    c_ = C // 2
    cin_pg = C // groups
    eps = 1e-5

    key = jax.random.PRNGKey(0)
    k_x, k_w2, k_w3, k_bn = jax.random.split(key, 4)
    x = jax.random.normal(k_x, (N, C, H, W), jnp.float32)

    # deterministic synthetic parameters (conv weights + BatchNorm stats, eval mode)
    w2 = 0.1 * jax.random.normal(k_w2, (c_, cin_pg, 3, 3), jnp.float32)
    w3 = 0.1 * jax.random.normal(k_w3, (c_, cin_pg, 3, 3), jnp.float32)
    bk = jax.random.split(k_bn, 8)
    gamma2 = 1.0 + 0.1 * jax.random.normal(bk[0], (c_,), jnp.float32)
    beta2 = 0.05 * jax.random.normal(bk[1], (c_,), jnp.float32)
    mean2 = 0.1 * jax.random.normal(bk[2], (c_,), jnp.float32)
    var2 = jnp.abs(jax.random.normal(bk[3], (c_,), jnp.float32)) + 0.5
    gamma3 = 1.0 + 0.1 * jax.random.normal(bk[4], (c_,), jnp.float32)
    beta3 = 0.05 * jax.random.normal(bk[5], (c_,), jnp.float32)
    mean3 = 0.1 * jax.random.normal(bk[6], (c_,), jnp.float32)
    var3 = jnp.abs(jax.random.normal(bk[7], (c_,), jnp.float32)) + 0.5

    # fold BN into conv: y = conv(x) * scale + bias
    scale2 = gamma2 / jnp.sqrt(var2 + eps)
    biasv2 = beta2 - mean2 * scale2
    scale3 = gamma3 / jnp.sqrt(var3 + eps)
    biasv3 = beta3 - mean3 * scale3

    w_all, bias = build_folded_weights(w2, w3, scale2, biasv2, scale3, biasv3, groups)

    out = jax.block_until_ready(reduction_forward(x, w_all, bias))

    ref = reference(x, w2, w3, scale2, biasv2, scale3, biasv3, groups)
    # tolerance relaxed from 1e-4 because conv + pool operands are deliberately bf16 on-chip
    np.testing.assert_allclose(np.asarray(out), np.asarray(ref), atol=3e-2, rtol=3e-2)

    print("KERNEL_OK")
</pallas_src>

<mosaic_0001>
module attributes {stable_mosaic.version = 11 : i64} {
  func.func @_reduction_kernel(%arg0: i32, %arg1: memref<576x128xbf16, #tpu.memory_space<vmem>>, %arg2: memref<9x128xf32, #tpu.memory_space<vmem>>, %arg3: memref<32x576xbf16, #tpu.memory_space<vmem>>, %arg4: memref<32x1xf32, #tpu.memory_space<vmem>>, %arg5: memref<32x128xf32, #tpu.memory_space<vmem>>) attributes {dimension_semantics = [#tpu.dimension_semantics<parallel>], iteration_bounds = array<i64: 1>, scalar_prefetch = 0 : i64, scratch_operands = 0 : i64, tpu.core_type = #tpu.core_type<tc>, window_params = [{transform_indices = @transform_0, window_bounds = array<i64: 576, 128>}, {transform_indices = @transform_1, window_bounds = array<i64: 9, 128>}, {pipeline_mode = #tpu.pipeline_mode<synchronous>, transform_indices = @transform_2, window_bounds = array<i64: 32, 576>}, {pipeline_mode = #tpu.pipeline_mode<synchronous>, transform_indices = @transform_3, window_bounds = array<i64: 32, 1>}, {transform_indices = @transform_4, window_bounds = array<i64: 32, 128>}]} {
    %c0 = arith.constant 0 : index
    %c0_0 = arith.constant 0 : index
    %0 = vector.load %arg3[%c0, %c0_0] : memref<32x576xbf16, #tpu.memory_space<vmem>>, vector<32x576xbf16>
    %c0_1 = arith.constant 0 : index
    %c0_2 = arith.constant 0 : index
    %1 = vector.load %arg1[%c0_1, %c0_2] : memref<576x128xbf16, #tpu.memory_space<vmem>>, vector<576x128xbf16>
    %cst = arith.constant dense<0.000000e+00> : vector<32x128xf32>
    %2 = tpu.matmul %0, %1, %cst {dimension_numbers = #tpu.dot_dimension_numbers<[1], [0], [0], [1], [0, 0, 1, 1], [], []>} : vector<32x576xbf16>, vector<576x128xbf16>, vector<32x128xf32> -> vector<32x128xf32>
    %c0_3 = arith.constant 0 : index
    %c0_4 = arith.constant 0 : index
    %3 = vector.load %arg4[%c0_3, %c0_4] : memref<32x1xf32, #tpu.memory_space<vmem>>, vector<32x1xf32>
    %4 = vector.broadcast %3 : vector<32x1xf32> to vector<32x128xf32>
    %5 = arith.addf %2, %4 : vector<32x128xf32>
    %c0_5 = arith.constant 0 : index
    %c0_6 = arith.constant 0 : index
    %6 = vector.load %arg1[%c0_5, %c0_6] : memref<576x128xbf16, #tpu.memory_space<vmem>>, vector<32x128xbf16>
    %c0_7 = arith.constant 0 : index
    %c0_8 = arith.constant 0 : index
    %7 = vector.load %arg2[%c0_7, %c0_8] : memref<9x128xf32, #tpu.memory_space<vmem>>, vector<1x128xf32>
    %8 = arith.extf %6 : vector<32x128xbf16> to vector<32x128xf32>
    %9 = vector.broadcast %7 : vector<1x128xf32> to vector<32x128xf32>
    %10 = arith.addf %8, %9 : vector<32x128xf32>
    %c32 = arith.constant 32 : index
    %c0_9 = arith.constant 0 : index
    %11 = vector.load %arg1[%c32, %c0_9] : memref<576x128xbf16, #tpu.memory_space<vmem>>, vector<32x128xbf16>
    %c1 = arith.constant 1 : index
    %c0_10 = arith.constant 0 : index
    %12 = vector.load %arg2[%c1, %c0_10] : memref<9x128xf32, #tpu.memory_space<vmem>>, vector<1x128xf32>
    %13 = arith.extf %11 : vector<32x128xbf16> to vector<32x128xf32>
    %14 = vector.broadcast %12 : vector<1x128xf32> to vector<32x128xf32>
    %15 = arith.addf %13, %14 : vector<32x128xf32>
    %16 = arith.maximumf %10, %15 : vector<32x128xf32>
    %c64 = arith.constant 64 : index
    %c0_11 = arith.constant 0 : index
    %17 = vector.load %arg1[%c64, %c0_11] : memref<576x128xbf16, #tpu.memory_space<vmem>>, vector<32x128xbf16>
    %c2 = arith.constant 2 : index
    %c0_12 = arith.constant 0 : index
    %18 = vector.load %arg2[%c2, %c0_12] : memref<9x128xf32, #tpu.memory_space<vmem>>, vector<1x128xf32>
    %19 = arith.extf %17 : vector<32x128xbf16> to vector<32x128xf32>
    %20 = vector.broadcast %18 : vector<1x128xf32> to vector<32x128xf32>
    %21 = arith.addf %19, %20 : vector<32x128xf32>
    %22 = arith.maximumf %16, %21 : vector<32x128xf32>
    %c96 = arith.constant 96 : index
    %c0_13 = arith.constant 0 : index
    %23 = vector.load %arg1[%c96, %c0_13] : memref<576x128xbf16, #tpu.memory_space<vmem>>, vector<32x128xbf16>
    %c3 = arith.constant 3 : index
    %c0_14 = arith.constant 0 : index
    %24 = vector.load %arg2[%c3, %c0_14] : memref<9x128xf32, #tpu.memory_space<vmem>>, vector<1x128xf32>
    %25 = arith.extf %23 : vector<32x128xbf16> to vector<32x128xf32>
    %26 = vector.broadcast %24 : vector<1x128xf32> to vector<32x128xf32>
    %27 = arith.addf %25, %26 : vector<32x128xf32>
    %28 = arith.maximumf %22, %27 : vector<32x128xf32>
    %c128 = arith.constant 128 : index
    %c0_15 = arith.constant 0 : index
    %29 = vector.load %arg1[%c128, %c0_15] : memref<576x128xbf16, #tpu.memory_space<vmem>>, vector<32x128xbf16>
    %c4 = arith.constant 4 : index
    %c0_16 = arith.constant 0 : index
    %30 = vector.load %arg2[%c4, %c0_16] : memref<9x128xf32, #tpu.memory_space<vmem>>, vector<1x128xf32>
    %31 = arith.extf %29 : vector<32x128xbf16> to vector<32x128xf32>
    %32 = vector.broadcast %30 : vector<1x128xf32> to vector<32x128xf32>
    %33 = arith.addf %31, %32 : vector<32x128xf32>
    %34 = arith.maximumf %28, %33 : vector<32x128xf32>
    %c160 = arith.constant 160 : index
    %c0_17 = arith.constant 0 : index
    %35 = vector.load %arg1[%c160, %c0_17] : memref<576x128xbf16, #tpu.memory_space<vmem>>, vector<32x128xbf16>
    %c5 = arith.constant 5 : index
    %c0_18 = arith.constant 0 : index
    %36 = vector.load %arg2[%c5, %c0_18] : memref<9x128xf32, #tpu.memory_space<vmem>>, vector<1x128xf32>
    %37 = arith.extf %35 : vector<32x128xbf16> to vector<32x128xf32>
    %38 = vector.broadcast %36 : vector<1x128xf32> to vector<32x128xf32>
    %39 = arith.addf %37, %38 : vector<32x128xf32>
    %40 = arith.maximumf %34, %39 : vector<32x128xf32>
    %c192 = arith.constant 192 : index
    %c0_19 = arith.constant 0 : index
    %41 = vector.load %arg1[%c192, %c0_19] : memref<576x128xbf16, #tpu.memory_space<vmem>>, vector<32x128xbf16>
    %c6 = arith.constant 6 : index
    %c0_20 = arith.constant 0 : index
    %42 = vector.load %arg2[%c6, %c0_20] : memref<9x128xf32, #tpu.memory_space<vmem>>, vector<1x128xf32>
    %43 = arith.extf %41 : vector<32x128xbf16> to vector<32x128xf32>
    %44 = vector.broadcast %42 : vector<1x128xf32> to vector<32x128xf32>
    %45 = arith.addf %43, %44 : vector<32x128xf32>
    %46 = arith.maximumf %40, %45 : vector<32x128xf32>
    %c224 = arith.constant 224 : index
    %c0_21 = arith.constant 0 : index
    %47 = vector.load %arg1[%c224, %c0_21] : memref<576x128xbf16, #tpu.memory_space<vmem>>, vector<32x128xbf16>
    %c7 = arith.constant 7 : index
    %c0_22 = arith.constant 0 : index
    %48 = vector.load %arg2[%c7, %c0_22] : memref<9x128xf32, #tpu.memory_space<vmem>>, vector<1x128xf32>
    %49 = arith.extf %47 : vector<32x128xbf16> to vector<32x128xf32>
    %50 = vector.broadcast %48 : vector<1x128xf32> to vector<32x128xf32>
    %51 = arith.addf %49, %50 : vector<32x128xf32>
    %52 = arith.maximumf %46, %51 : vector<32x128xf32>
    %c256 = arith.constant 256 : index
    %c0_23 = arith.constant 0 : index
    %53 = vector.load %arg1[%c256, %c0_23] : memref<576x128xbf16, #tpu.memory_space<vmem>>, vector<32x128xbf16>
    %c8 = arith.constant 8 : index
    %c0_24 = arith.constant 0 : index
    %54 = vector.load %arg2[%c8, %c0_24] : memref<9x128xf32, #tpu.memory_space<vmem>>, vector<1x128xf32>
    %55 = arith.extf %53 : vector<32x128xbf16> to vector<32x128xf32>
    %56 = vector.broadcast %54 : vector<1x128xf32> to vector<32x128xf32>
    %57 = arith.addf %55, %56 : vector<32x128xf32>
    %58 = arith.maximumf %52, %57 : vector<32x128xf32>
    %59 = arith.addf %5, %58 : vector<32x128xf32>
    %cst_25 = arith.constant 0.000000e+00 : f32
    %60 = vector.broadcast %cst_25 : f32 to vector<32x128xf32>
    %61 = arith.maximumf %59, %60 : vector<32x128xf32>
    %c0_26 = arith.constant 0 : index
    %c0_27 = arith.constant 0 : index
    %62 = vector.load %arg5[%c0_26, %c0_27] : memref<32x128xf32, #tpu.memory_space<vmem>>, vector<32x128xf32>
    tpu.vector_store %arg5[%c0_26, %c0_27], %61 {strides = array<i32>} : memref<32x128xf32, #tpu.memory_space<vmem>>, vector<32x128xf32>,
    return
  }
  func.func @transform_0(%arg0: i32) -> (i32, i32) {
    %c0_i32 = arith.constant 0 : i32
    %c0_i32_0 = arith.constant 0 : i32
    return %c0_i32, %arg0 : i32, i32
  }
  func.func @transform_1(%arg0: i32) -> (i32, i32) {
    %c0_i32 = arith.constant 0 : i32
    %c0_i32_0 = arith.constant 0 : i32
    return %c0_i32, %arg0 : i32, i32
  }
  func.func @transform_2(%arg0: i32) -> (i32, i32) {
    %c0_i32 = arith.constant 0 : i32
    %c0_i32_0 = arith.constant 0 : i32
    %c0_i32_1 = arith.constant 0 : i32
    return %c0_i32, %c0_i32_0 : i32, i32
  }
  func.func @transform_3(%arg0: i32) -> (i32, i32) {
    %c0_i32 = arith.constant 0 : i32
    %c0_i32_0 = arith.constant 0 : i32
    %c0_i32_1 = arith.constant 0 : i32
    return %c0_i32, %c0_i32_0 : i32, i32
  }
  func.func @transform_4(%arg0: i32) -> (i32, i32) {
    %c0_i32 = arith.constant 0 : i32
    %c0_i32_0 = arith.constant 0 : i32
    return %c0_i32, %arg0 : i32, i32
  }
}

</mosaic_0001>

<llo_original>
// kernel: tpu_custom_call.1
$region0: #{tpu_custom_call.1}
  #allocation0 [shape = 'u32[]', space=smem, size = 0x4, offset = 0x4, fixed_abs, tag = 'smem constant byte address 0x4 - core index']
  #allocation1 [shape = 'u32[72,128]{1,0:T(1,128)}', space=vmem, size = 0x9000, scoped, tag = 'internal scratch']
  %s0 = inlined_call_operand.hbm [shape: bf16[576,128], index: 0, kind: input, shape index: {}]
  %s1 = inlined_call_operand.vmem [shape: f32[9,128], index: 1, kind: input, shape index: {}]
  %s2 = inlined_call_operand.hbm [shape: bf16[32,576], index: 2, kind: input, shape index: {}]
  %s3 = inlined_call_operand.vmem [shape: f32[32,1], index: 3, kind: input, shape index: {}]
  %s4 = inlined_call_operand.hbm [shape: f32[32,128], index: 4, kind: output, shape index: {}]
  %s5 = sld [smem:[#allocation0]]
  $region34: #{tpu_custom_call.1} parent=0
    _
  %s7 = ssub.s32 1, %s5
  %s8 = scalar_select 0, %s7, %s5
  $region1: #{tpu_custom_call.1} parent=0
    #allocation2 [shape = 'u8[147456]{0}', space=vmem, size = 0x24000, scoped, tag = 'input window, operand 0, single buffered']
    #allocation3 [shape = 's32[1]{0}', space=sflag, size = 0x4, scoped, tag = 'scoped memory for tpu_custom_call.1']
    #allocation4 [shape = 's32[1]{0}', space=sflag, size = 0x4, scoped, tag = 'scoped memory for tpu_custom_call.1']
    #allocation5 [shape = 'u8[40960]{0}', space=vmem, size = 0xa000, scoped, tag = 'input window, operand 2, single buffered']
    #allocation6 [shape = 's32[1]{0}', space=sflag, size = 0x4, scoped, tag = 'scoped memory for tpu_custom_call.1']
    #allocation7 [shape = 'u8[16384]{0}', space=vmem, size = 0x4000, scoped, tag = 'output window, operand 0, single buffered']
    %9 = vsyncpa [#allocation3], 0
    %10 = vsyncpa [#allocation6], 0
    %11 = vsyncpa [#allocation4], 0
    // Predicated region
    $region2: #{tpu_custom_call.1} parent=1 // pred_check
      _
    $region3: #{tpu_custom_call.1} parent=1 // pred_check_branch
      %13 = sbr.rel (0) target = $region5
    $region4: #{tpu_custom_call.1} parent=1 // pred_region
      %15 = vsyncadd [#allocation3], 0
      %s16 = sshll.u32 %s0, 4
      %s17 = int_to_ptr.hbm [resolvable:$true] %s16
      %s18 = sshll.u32 [#allocation2], 4
      %s19 = int_to_ptr.vmem [resolvable:$true] %s18
      %24 = dma.hbm_to_vmem [thread:$0]  %s17, 4608, %s19, [#allocation3], 64, 64, 4
    $region5: #{tpu_custom_call.1} parent=1 // pred_fallthru
      _
    // Predicated region
    $region6: #{tpu_custom_call.1} parent=1 // pred_check
      _
    $region7: #{tpu_custom_call.1} parent=1 // pred_check_branch
      %26 = sbr.rel (0) target = $region9
    $region8: #{tpu_custom_call.1} parent=1 // pred_region
      _
    $region9: #{tpu_custom_call.1} parent=1 // pred_fallthru
      _
    // Predicated region
    $region10: #{tpu_custom_call.1} parent=1 // pred_check
      _
    $region11: #{tpu_custom_call.1} parent=1 // pred_check_branch
      %28 = sbr.rel (0) target = $region13
    $region12: #{tpu_custom_call.1} parent=1 // pred_region
      %30 = vsyncadd [#allocation6], 0
      %s31 = sshll.u32 %s2, 4
      %s32 = int_to_ptr.hbm [resolvable:$true] %s31
      %s33 = sshll.u32 [#allocation5], 4
      %s34 = int_to_ptr.vmem [resolvable:$true] %s33
      %39 = dma.hbm_to_vmem [thread:$0]  %s32, 1280, %s34, [#allocation6], 320, 320, 20
    $region13: #{tpu_custom_call.1} parent=1 // pred_fallthru
      _
    // Predicated region
    $region14: #{tpu_custom_call.1} parent=1 // pred_check
      _
    $region15: #{tpu_custom_call.1} parent=1 // pred_check_branch
      %41 = sbr.rel (0) target = $region17
    $region16: #{tpu_custom_call.1} parent=1 // pred_region
      _
    $region17: #{tpu_custom_call.1} parent=1 // pred_fallthru
      _
    // Predicated region
    $region18: #{tpu_custom_call.1} parent=1 // pred_check
      _
    $region19: #{tpu_custom_call.1} parent=1 // pred_check_branch
      %43 = sbr.rel (0) target = $region21
    $region20: #{tpu_custom_call.1} parent=1 // pred_region
      %45 = dma.done [#allocation3], 4608
    $region21: #{tpu_custom_call.1} parent=1 // pred_fallthru
      _
    // Predicated region
    $region22: #{tpu_custom_call.1} parent=1 // pred_check
      _
    $region23: #{tpu_custom_call.1} parent=1 // pred_check_branch
      %47 = sbr.rel (0) target = $region25
    $region24: #{tpu_custom_call.1} parent=1 // pred_region
      %49 = dma.done [#allocation6], 1280
    $region25: #{tpu_custom_call.1} parent=1 // pred_fallthru
      _
    %v51 = vld [vmem:[#allocation5] sm:$0xff]
    %v52 = vld [vmem:[#allocation5 + $0x8] sm:$0xff]
    %v53 = vld [vmem:[#allocation5 + $0x10] sm:$0xf]
    %v54 = vld [vmem:[#allocation5 + $0x14] sm:$0xff]
    %v55 = vld [vmem:[#allocation5 + $0x1c] sm:$0xff]
    %v56 = vld [vmem:[#allocation5 + $0x24] sm:$0xf]
    %v57 = vld [vmem:[#allocation5 + $0x28] sm:$0xff]
    %v58 = vld [vmem:[#allocation5 + $0x30] sm:$0xff]
    %v59 = vld [vmem:[#allocation5 + $0x38] sm:$0xf]
    %v60 = vld [vmem:[#allocation5 + $0x3c] sm:$0xff]
    %v61 = vld [vmem:[#allocation5 + $0x44] sm:$0xff]
    %v62 = vld [vmem:[#allocation5 + $0x4c] sm:$0xf]
    %v63 = vld [vmem:[#allocation2] sm:$0xf]
    %v64 = vld [vmem:[#allocation2 + $0x4] sm:$0xf]
    %v65 = vld [vmem:[#allocation2 + $0x8] sm:$0xf]
    %v66 = vld [vmem:[#allocation2 + $0xc] sm:$0xf]
    %v67 = vld [vmem:[#allocation2 + $0x10] sm:$0xf]
    %v68 = vld [vmem:[#allocation2 + $0x14] sm:$0xf]
    %v69 = vld [vmem:[#allocation2 + $0x18] sm:$0xf]
    %v70 = vld [vmem:[#allocation2 + $0x1c] sm:$0xf]
    %v71 = vld [vmem:[#allocation2 + $0x20] sm:$0xf]
    %v72 = vld [vmem:[#allocation2 + $0x24] sm:$0xf]
    %v73 = vld [vmem:[#allocation2 + $0x28] sm:$0xf]
    %v74 = vld [vmem:[#allocation2 + $0x2c] sm:$0xf]
    %v75 = vld [vmem:[#allocation2 + $0x30] sm:$0xf]
    %v76 = vld [vmem:[#allocation2 + $0x34] sm:$0xf]
    %v77 = vld [vmem:[#allocation2 + $0x38] sm:$0xf]
    %v78 = vld [vmem:[#allocation2 + $0x3c] sm:$0xf]
    %v79 = vld [vmem:[#allocation2 + $0x40] sm:$0xf]
    %v80 = vld [vmem:[#allocation2 + $0x44] sm:$0xf]
    %v81 = vld [vmem:[#allocation2 + $0x48] sm:$0xf]
    %v82 = vld [vmem:[#allocation2 + $0x4c] sm:$0xf]
    %v83 = vld [vmem:[#allocation2 + $0x50] sm:$0xf]
    %v84 = vld [vmem:[#allocation2 + $0x54] sm:$0xf]
    %v85 = vld [vmem:[#allocation2 + $0x58] sm:$0xf]
    %v86 = vld [vmem:[#allocation2 + $0x5c] sm:$0xf]
    %v87 = vld [vmem:[#allocation2 + $0x60] sm:$0xf]
    %v88 = vld [vmem:[#allocation2 + $0x64] sm:$0xf]
    %v89 = vld [vmem:[#allocation2 + $0x68] sm:$0xf]
    %v90 = vld [vmem:[#allocation2 + $0x6c] sm:$0xf]
    %v91 = vld [vmem:[#allocation2 + $0x70] sm:$0xf]
    %v92 = vld [vmem:[#allocation2 + $0x74] sm:$0xf]
    %v93 = vld [vmem:[#allocation2 + $0x78] sm:$0xf]
    %v94 = vld [vmem:[#allocation2 + $0x7c] sm:$0xf]
    %v95 = vld [vmem:[#allocation2 + $0x80] sm:$0xf]
    %v96 = vld [vmem:[#allocation2 + $0x84] sm:$0xf]
    %v97 = vld [vmem:[#allocation2 + $0x88] sm:$0xf]
    %v98 = vld [vmem:[#allocation2 + $0x8c] sm:$0xf]
    %v99 = vld [vmem:[#allocation2 + $0x90] sm:$0xf]
    %v100 = vld [vmem:[#allocation2 + $0x94] sm:$0xf]
    %v101 = vld [vmem:[#allocation2 + $0x98] sm:$0xf]
    %v102 = vld [vmem:[#allocation2 + $0x9c] sm:$0xf]
    %v103 = vld [vmem:[#allocation2 + $0xa0] sm:$0xf]
    %v104 = vld [vmem:[#allocation2 + $0xa4] sm:$0xf]
    %v105 = vld [vmem:[#allocation2 + $0xa8] sm:$0xf]
    %v106 = vld [vmem:[#allocation2 + $0xac] sm:$0xf]
    %v107 = vld [vmem:[#allocation2 + $0xb0] sm:$0xf]
    %v108 = vld [vmem:[#allocation2 + $0xb4] sm:$0xf]
    %v109 = vld [vmem:[#allocation2 + $0xb8] sm:$0xf]
    %v110 = vld [vmem:[#allocation2 + $0xbc] sm:$0xf]
    %v111 = vld [vmem:[#allocation2 + $0xc0] sm:$0xf]
    %v112 = vld [vmem:[#allocation2 + $0xc4] sm:$0xf]
    %v113 = vld [vmem:[#allocation2 + $0xc8] sm:$0xf]
    %v114 = vld [vmem:[#allocation2 + $0xcc] sm:$0xf]
    %v115 = vld [vmem:[#allocation2 + $0xd0] sm:$0xf]
    %v116 = vld [vmem:[#allocation2 + $0xd4] sm:$0xf]
    %v117 = vld [vmem:[#allocation2 + $0xd8] sm:$0xf]
    %v118 = vld [vmem:[#allocation2 + $0xdc] sm:$0xf]
    %v119 = vld [vmem:[#allocation2 + $0xe0] sm:$0xf]
    %v120 = vld [vmem:[#allocation2 + $0xe4] sm:$0xf]
    %v121 = vld [vmem:[#allocation2 + $0xe8] sm:$0xf]
    %v122 = vld [vmem:[#allocation2 + $0xec] sm:$0xf]
    %v123 = vld [vmem:[#allocation2 + $0xf0] sm:$0xf]
    %v124 = vld [vmem:[#allocation2 + $0xf4] sm:$0xf]
    %v125 = vld [vmem:[#allocation2 + $0xf8] sm:$0xf]
    %v126 = vld [vmem:[#allocation2 + $0xfc] sm:$0xf]
    %v127 = vld [vmem:[#allocation2 + $0x100] sm:$0xf]
    %v128 = vld [vmem:[#allocation2 + $0x104] sm:$0xf]
    %v129 = vld [vmem:[#allocation2 + $0x108] sm:$0xf]
    %v130 = vld [vmem:[#allocation2 + $0x10c] sm:$0xf]
    %v131 = vld [vmem:[#allocation2 + $0x110] sm:$0xf]
    %v132 = vld [vmem:[#allocation2 + $0x114] sm:$0xf]
    %v133 = vld [vmem:[#allocation2 + $0x118] sm:$0xf]
    %v134 = vld [vmem:[#allocation2 + $0x11c] sm:$0xf]
    %v135 = vld [vmem:[%s3] sm:$0xff]
    %v136 = vld [vmem:[%s3 + $0x8] sm:$0xff]
    %v137 = vld [vmem:[%s3 + $0x10] sm:$0xff]
    %v138 = vld [vmem:[%s3 + $0x18] sm:$0xff]
    %140 = vset.pattern.permute.xlu0 0
    %141 = vperm.xlu0 %140, %v135
    %v142 = vpop.permute.xlu0 %141
    %145 = vset.pattern.permute.xlu0 0
    %146 = vperm.xlu0 %145, %v136
    %v147 = vpop.permute.xlu0 %146
    %150 = vset.pattern.permute.xlu0 0
    %151 = vperm.xlu0 %150, %v137
    %v152 = vpop.permute.xlu0 %151
    %155 = vset.pattern.permute.xlu0 0
    %156 = vperm.xlu0 %155, %v138
    %v157 = vpop.permute.xlu0 %156
    %v171 = vunpack.c.l.b16 %v51
    %v172 = vunpack.c.h.b16 %v51
    %v173 = vunpack.c.l.b16 %v52
    %v174 = vunpack.c.h.b16 %v52
    %v175 = vunpack.c.l.b16 %v53
    %v176 = vunpack.c.l.b16 %v54
    %v177 = vunpack.c.h.b16 %v54
    %v178 = vunpack.c.l.b16 %v55
    %v179 = vunpack.c.h.b16 %v55
    %v180 = vunpack.c.l.b16 %v56
    %v181 = vunpack.c.l.b16 %v57
    %v182 = vunpack.c.h.b16 %v57
    %v183 = vunpack.c.l.b16 %v58
    %v184 = vunpack.c.h.b16 %v58
    %v185 = vunpack.c.l.b16 %v59
    %v186 = vunpack.c.l.b16 %v60
    %v187 = vunpack.c.h.b16 %v60
    %v188 = vunpack.c.l.b16 %v61
    %v189 = vunpack.c.h.b16 %v61
    %v190 = vunpack.c.l.b16 %v62
    %v191 = vpack.c.b16 %v176, %v171
    %v192 = vpack.c.b16 %v177, %v172
    %v193 = vpack.c.b16 %v178, %v173
    %v194 = vpack.c.b16 %v179, %v174
    %v195 = vpack.c.b16 %v180, %v175
    %v196 = vpack.c.b16 %v186, %v181
    %v197 = vpack.c.b16 %v187, %v182
    %v198 = vpack.c.b16 %v188, %v183
    %v199 = vpack.c.b16 %v189, %v184
    %v200 = vpack.c.b16 %v190, %v185
    %v281 = vunpack.c.l.b16 %v63
    %v282 = vunpack.c.l.b16 %v64
    %v283 = vunpack.c.l.b16 %v65
    %v284 = vunpack.c.l.b16 %v66
    %v285 = vunpack.c.l.b16 %v67
    %v286 = vunpack.c.l.b16 %v68
    %v287 = vunpack.c.l.b16 %v69
    %v288 = vunpack.c.l.b16 %v70
    %v289 = vunpack.c.l.b16 %v71
    %v290 = vunpack.c.l.b16 %v72
    %v291 = vunpack.c.l.b16 %v73
    %v292 = vunpack.c.l.b16 %v74
    %v293 = vunpack.c.l.b16 %v75
    %v294 = vunpack.c.l.b16 %v76
    %v295 = vunpack.c.l.b16 %v77
    %v296 = vunpack.c.l.b16 %v78
    %v297 = vunpack.c.l.b16 %v79
    %v298 = vunpack.c.l.b16 %v80
    %v299 = vunpack.c.l.b16 %v81
    %v300 = vunpack.c.l.b16 %v82
    %v301 = vunpack.c.l.b16 %v83
    %v302 = vunpack.c.l.b16 %v84
    %v303 = vunpack.c.l.b16 %v85
    %v304 = vunpack.c.l.b16 %v86
    %v305 = vunpack.c.l.b16 %v87
    %v306 = vunpack.c.l.b16 %v88
    %v307 = vunpack.c.l.b16 %v89
    %v308 = vunpack.c.l.b16 %v90
    %v309 = vunpack.c.l.b16 %v91
    %v310 = vunpack.c.l.b16 %v92
    %v311 = vunpack.c.l.b16 %v93
    %v312 = vunpack.c.l.b16 %v94
    %v313 = vunpack.c.l.b16 %v95
    %v314 = vunpack.c.l.b16 %v96
    %v315 = vunpack.c.l.b16 %v97
    %v316 = vunpack.c.l.b16 %v98
    %v317 = vunpack.c.l.b16 %v99
    %v318 = vunpack.c.l.b16 %v100
    %v319 = vunpack.c.l.b16 %v101
    %v320 = vunpack.c.l.b16 %v102
    %v321 = vunpack.c.l.b16 %v103
    %v322 = vunpack.c.l.b16 %v104
    %v323 = vunpack.c.l.b16 %v105
    %v324 = vunpack.c.l.b16 %v106
    %v325 = vunpack.c.l.b16 %v107
    %v326 = vunpack.c.l.b16 %v108
    %v327 = vunpack.c.l.b16 %v109
    %v328 = vunpack.c.l.b16 %v110
    %v329 = vunpack.c.l.b16 %v111
    %v330 = vunpack.c.l.b16 %v112
    %v331 = vunpack.c.l.b16 %v113
    %v332 = vunpack.c.l.b16 %v114
    %v333 = vunpack.c.l.b16 %v115
    %v334 = vunpack.c.l.b16 %v116
    %v335 = vunpack.c.l.b16 %v117
    %v336 = vunpack.c.l.b16 %v118
    %v337 = vunpack.c.l.b16 %v119
    %v338 = vunpack.c.l.b16 %v120
    %v339 = vunpack.c.l.b16 %v121
    %v340 = vunpack.c.l.b16 %v122
    %v341 = vunpack.c.l.b16 %v123
    %v342 = vunpack.c.l.b16 %v124
    %v343 = vunpack.c.l.b16 %v125
    %v344 = vunpack.c.l.b16 %v126
    %v345 = vunpack.c.l.b16 %v127
    %v346 = vunpack.c.l.b16 %v128
    %v347 = vunpack.c.l.b16 %v129
    %v348 = vunpack.c.l.b16 %v130
    %v349 = vunpack.c.l.b16 %v131
    %v350 = vunpack.c.l.b16 %v132
    %v351 = vunpack.c.l.b16 %v133
    %v352 = vunpack.c.l.b16 %v134
    %v353 = vpack.c.b16 %v282, %v281
    %v354 = vpack.c.b16 %v284, %v283
    %v355 = vpack.c.b16 %v286, %v285
    %v356 = vpack.c.b16 %v288, %v287
    %v357 = vpack.c.b16 %v290, %v289
    %v358 = vpack.c.b16 %v292, %v291
    %v359 = vpack.c.b16 %v294, %v293
    %v360 = vpack.c.b16 %v296, %v295
    %v361 = vpack.c.b16 %v298, %v297
    %v362 = vpack.c.b16 %v300, %v299
    %v363 = vpack.c.b16 %v302, %v301
    %v364 = vpack.c.b16 %v304, %v303
    %v365 = vpack.c.b16 %v306, %v305
    %v366 = vpack.c.b16 %v308, %v307
    %v367 = vpack.c.b16 %v310, %v309
    %v368 = vpack.c.b16 %v312, %v311
    %v369 = vpack.c.b16 %v314, %v313
    %v370 = vpack.c.b16 %v316, %v315
    %v371 = vpack.c.b16 %v318, %v317
    %v372 = vpack.c.b16 %v320, %v319
    %v373 = vpack.c.b16 %v322, %v321
    %v374 = vpack.c.b16 %v324, %v323
    %v375 = vpack.c.b16 %v326, %v325
    %v376 = vpack.c.b16 %v328, %v327
    %v377 = vpack.c.b16 %v330, %v329
    %v378 = vpack.c.b16 %v332, %v331
    %v379 = vpack.c.b16 %v334, %v333
    %v380 = vpack.c.b16 %v336, %v335
    %v381 = vpack.c.b16 %v338, %v337
    %v382 = vpack.c.b16 %v340, %v339
    %v383 = vpack.c.b16 %v342, %v341
    %v384 = vpack.c.b16 %v344, %v343
    %v385 = vpack.c.b16 %v346, %v345
    %v386 = vpack.c.b16 %v348, %v347
    %v387 = vpack.c.b16 %v350, %v349
    %v388 = vpack.c.b16 %v352, %v351
    %vm425 = vcmask 523264
    %v427 = vsel %vm425, %v195, 0
    %v430 = vsel %vm425, %v200, 0
    %432 = vmatpush.bf16.msra.mxu0 %v360
    %433 = vmatpush.bf16.msra.mxu0 %v359
    %434 = vmatpush.bf16.msra.mxu0 %v358
    %435 = vmatpush.bf16.msra.mxu0 %v357
    %436 = vmatpush.bf16.msra.mxu0 %v356
    %437 = vmatpush.bf16.msra.mxu0 %v355
    %438 = vmatpush.bf16.msra.mxu0 %v354
    %439 = vmatpush.bf16.msra.mxu0 %v353
    %440 = vmatmul.bf16.gmra.mxu0 %v191
    %v441 = vpop.f32.mrf.mxu0
    %v442 = vadd.f32 %v142, %v441
    %v443 = vpop.f32.mrf.mxu0
    %v444 = vadd.f32 %v147, %v443
    %445 = vmatmul.bf16.gmra.mxu0 %v196
    %v446 = vpop.f32.mrf.mxu0
    %v447 = vadd.f32 %v152, %v446
    %v448 = vpop.f32.mrf.mxu0
    %v449 = vadd.f32 %v157, %v448
    %450 = vdwg.mxu0
    %451 = vmatpush.bf16.msra.mxu0 %v368
    %452 = vmatpush.bf16.msra.mxu0 %v367
    %453 = vmatpush.bf16.msra.mxu0 %v366
    %454 = vmatpush.bf16.msra.mxu0 %v365
    %455 = vmatpush.bf16.msra.mxu0 %v364
    %456 = vmatpush.bf16.msra.mxu0 %v363
    %457 = vmatpush.bf16.msra.mxu0 %v362
    %458 = vmatpush.bf16.msra.mxu0 %v361
    %459 = vmatmul.bf16.gmra.mxu0 %v192
    %v460 = vpop.f32.mrf.mxu0
    %v461 = vadd.f32 %v442, %v460
    %v462 = vpop.f32.mrf.mxu0
    %v463 = vadd.f32 %v444, %v462
    %464 = vmatmul.bf16.gmra.mxu0 %v197
    %v465 = vpop.f32.mrf.mxu0
    %v466 = vadd.f32 %v447, %v465
    %v467 = vpop.f32.mrf.mxu0
    %v468 = vadd.f32 %v449, %v467
    %469 = vdwg.mxu0
    %470 = vmatpush.bf16.msra.mxu0 %v376
    %471 = vmatpush.bf16.msra.mxu0 %v375
    %472 = vmatpush.bf16.msra.mxu0 %v374
    %473 = vmatpush.bf16.msra.mxu0 %v373
    %474 = vmatpush.bf16.msra.mxu0 %v372
    %475 = vmatpush.bf16.msra.mxu0 %v371
    %476 = vmatpush.bf16.msra.mxu0 %v370
    %477 = vmatpush.bf16.msra.mxu0 %v369
    %478 = vmatmul.bf16.gmra.mxu0 %v193
    %v479 = vpop.f32.mrf.mxu0
    %v480 = vadd.f32 %v461, %v479
    %v481 = vpop.f32.mrf.mxu0
    %v482 = vadd.f32 %v463, %v481
    %483 = vmatmul.bf16.gmra.mxu0 %v198
    %v484 = vpop.f32.mrf.mxu0
    %v485 = vadd.f32 %v466, %v484
    %v486 = vpop.f32.mrf.mxu0
    %v487 = vadd.f32 %v468, %v486
    %488 = vdwg.mxu0
    %489 = vmatpush.bf16.msra.mxu0 %v384
    %490 = vmatpush.bf16.msra.mxu0 %v383
    %491 = vmatpush.bf16.msra.mxu0 %v382
    %492 = vmatpush.bf16.msra.mxu0 %v381
    %493 = vmatpush.bf16.msra.mxu0 %v380
    %494 = vmatpush.bf16.msra.mxu0 %v379
    %495 = vmatpush.bf16.msra.mxu0 %v378
    %496 = vmatpush.bf16.msra.mxu0 %v377
    %497 = vmatmul.bf16.gmra.mxu0 %v194
    %v498 = vpop.f32.mrf.mxu0
    %v499 = vadd.f32 %v480, %v498
    %v500 = vpop.f32.mrf.mxu0
    %v501 = vadd.f32 %v482, %v500
    %502 = vmatmul.bf16.gmra.mxu0 %v199
    %v503 = vpop.f32.mrf.mxu0
    %v504 = vadd.f32 %v485, %v503
    %v505 = vpop.f32.mrf.mxu0
    %v506 = vadd.f32 %v487, %v505
    %507 = vdwg.mxu0
    %508 = vmatpush.bf16.msra.mxu0 0
    %509 = vmatpush.bf16.msra.mxu0 0
    %510 = vmatpush.bf16.msra.mxu0 0
    %511 = vmatpush.bf16.msra.mxu0 0
    %512 = vmatpush.bf16.msra.mxu0 %v388
    %513 = vmatpush.bf16.msra.mxu0 %v387
    %514 = vmatpush.bf16.msra.mxu0 %v386
    %515 = vmatpush.bf16.msra.mxu0 %v385
    %516 = vmatmul.bf16.gmra.mxu0 %v427
    %v517 = vpop.f32.mrf.mxu0
    %v518 = vadd.f32 %v499, %v517
    %v519 = vpop.f32.mrf.mxu0
    %v520 = vadd.f32 %v501, %v519
    %521 = vmatmul.bf16.gmra.mxu0 %v430
    %v522 = vpop.f32.mrf.mxu0
    %v523 = vadd.f32 %v504, %v522
    %v524 = vpop.f32.mrf.mxu0
    %v525 = vadd.f32 %v506, %v524
    %526 = vdwg.mxu0
    %v527 = vld [vmem:[#allocation2] sm:$0xf]
    %v528 = vld [vmem:[#allocation2 + $0x4] sm:$0xf]
    %v529 = vld [vmem:[#allocation2 + $0x8] sm:$0xf]
    %v530 = vld [vmem:[#allocation2 + $0xc] sm:$0xf]
    %v531 = vld [vmem:[%s1] sm:$0x1]
    %v532 = vunpack.c.l.bf16 %v527
    %v533 = vunpack.c.l.bf16 %v528
    %v534 = vunpack.c.l.bf16 %v529
    %v535 = vunpack.c.l.bf16 %v530
    %v536 = vperm.slane %v531, 0
    %v537 = vadd.f32 %v532, %v536
    %v538 = vadd.f32 %v533, %v536
    %v539 = vadd.f32 %v534, %v536
    %v540 = vadd.f32 %v535, %v536
    %v541 = vld [vmem:[#allocation2 + $0x10] sm:$0xf]
    %v542 = vld [vmem:[#allocation2 + $0x14] sm:$0xf]
    %v543 = vld [vmem:[#allocation2 + $0x18] sm:$0xf]
    %v544 = vld [vmem:[#allocation2 + $0x1c] sm:$0xf]
    %v545 = vld [vmem:[%s1 + $0x1] sm:$0x1]
    %v546 = vunpack.c.l.bf16 %v541
    %v547 = vunpack.c.l.bf16 %v542
    %v548 = vunpack.c.l.bf16 %v543
    %v549 = vunpack.c.l.bf16 %v544
    %v550 = vperm.slane %v545, 0
    %v551 = vadd.f32 %v546, %v550
    %v552 = vadd.f32 %v547, %v550
    %v553 = vadd.f32 %v548, %v550
    %v554 = vadd.f32 %v549, %v550
    %v555 = vmax.f32 %v537, %v551
    %v556 = vmax.f32 %v538, %v552
    %v557 = vmax.f32 %v539, %v553
    %v558 = vmax.f32 %v540, %v554
    %v559 = vld [vmem:[#allocation2 + $0x20] sm:$0xf]
    %v560 = vld [vmem:[#allocation2 + $0x24] sm:$0xf]
    %v561 = vld [vmem:[#allocation2 + $0x28] sm:$0xf]
    %v562 = vld [vmem:[#allocation2 + $0x2c] sm:$0xf]
    %v563 = vld [vmem:[%s1 + $0x2] sm:$0x1]
    %v564 = vunpack.c.l.bf16 %v559
    %v565 = vunpack.c.l.bf16 %v560
    %v566 = vunpack.c.l.bf16 %v561
    %v567 = vunpack.c.l.bf16 %v562
    %v568 = vperm.slane %v563, 0
    %v569 = vadd.f32 %v564, %v568
    %v570 = vadd.f32 %v565, %v568
    %v571 = vadd.f32 %v566, %v568
    %v572 = vadd.f32 %v567, %v568
    %v573 = vmax.f32 %v555, %v569
    %v574 = vmax.f32 %v556, %v570
    %v575 = vmax.f32 %v557, %v571
    %v576 = vmax.f32 %v558, %v572
    %v577 = vld [vmem:[#allocation2 + $0x30] sm:$0xf]
    %v578 = vld [vmem:[#allocation2 + $0x34] sm:$0xf]
    %v579 = vld [vmem:[#allocation2 + $0x38] sm:$0xf]
    %v580 = vld [vmem:[#allocation2 + $0x3c] sm:$0xf]
    %v581 = vld [vmem:[%s1 + $0x3] sm:$0x1]
    %v582 = vunpack.c.l.bf16 %v577
    %v583 = vunpack.c.l.bf16 %v578
    %v584 = vunpack.c.l.bf16 %v579
    %v585 = vunpack.c.l.bf16 %v580
    %v586 = vperm.slane %v581, 0
    %v587 = vadd.f32 %v582, %v586
    %v588 = vadd.f32 %v583, %v586
    %v589 = vadd.f32 %v584, %v586
    %v590 = vadd.f32 %v585, %v586
    %v591 = vmax.f32 %v573, %v587
    %v592 = vmax.f32 %v574, %v588
    %v593 = vmax.f32 %v575, %v589
    %v594 = vmax.f32 %v576, %v590
    %v595 = vld [vmem:[#allocation2 + $0x40] sm:$0xf]
    %v596 = vld [vmem:[#allocation2 + $0x44] sm:$0xf]
    %v597 = vld [vmem:[#allocation2 + $0x48] sm:$0xf]
    %v598 = vld [vmem:[#allocation2 + $0x4c] sm:$0xf]
    %v599 = vld [vmem:[%s1 + $0x4] sm:$0x1]
    %v600 = vunpack.c.l.bf16 %v595
    %v601 = vunpack.c.l.bf16 %v596
    %v602 = vunpack.c.l.bf16 %v597
    %v603 = vunpack.c.l.bf16 %v598
    %v604 = vperm.slane %v599, 0
    %v605 = vadd.f32 %v600, %v604
    %v606 = vadd.f32 %v601, %v604
    %v607 = vadd.f32 %v602, %v604
    %v608 = vadd.f32 %v603, %v604
    %v609 = vmax.f32 %v591, %v605
    %v610 = vmax.f32 %v592, %v606
    %v611 = vmax.f32 %v593, %v607
    %v612 = vmax.f32 %v594, %v608
    %v613 = vld [vmem:[#allocation2 + $0x50] sm:$0xf]
    %v614 = vld [vmem:[#allocation2 + $0x54] sm:$0xf]
    %v615 = vld [vmem:[#allocation2 + $0x58] sm:$0xf]
    %v616 = vld [vmem:[#allocation2 + $0x5c] sm:$0xf]
    %v617 = vld [vmem:[%s1 + $0x5] sm:$0x1]
    %v618 = vunpack.c.l.bf16 %v613
    %v619 = vunpack.c.l.bf16 %v614
    %v620 = vunpack.c.l.bf16 %v615
    %v621 = vunpack.c.l.bf16 %v616
    %v622 = vperm.slane %v617, 0
    %v623 = vadd.f32 %v618, %v622
    %v624 = vadd.f32 %v619, %v622
    %v625 = vadd.f32 %v620, %v622
    %v626 = vadd.f32 %v621, %v622
    %v627 = vmax.f32 %v609, %v623
    %v628 = vmax.f32 %v610, %v624
    %v629 = vmax.f32 %v611, %v625
    %v630 = vmax.f32 %v612, %v626
    %v631 = vld [vmem:[#allocation2 + $0x60] sm:$0xf]
    %v632 = vld [vmem:[#allocation2 + $0x64] sm:$0xf]
    %v633 = vld [vmem:[#allocation2 + $0x68] sm:$0xf]
    %v634 = vld [vmem:[#allocation2 + $0x6c] sm:$0xf]
    %v635 = vld [vmem:[%s1 + $0x6] sm:$0x1]
    %v636 = vunpack.c.l.bf16 %v631
    %v637 = vunpack.c.l.bf16 %v632
    %v638 = vunpack.c.l.bf16 %v633
    %v639 = vunpack.c.l.bf16 %v634
    %v640 = vperm.slane %v635, 0
    %v641 = vadd.f32 %v636, %v640
    %v642 = vadd.f32 %v637, %v640
    %v643 = vadd.f32 %v638, %v640
    %v644 = vadd.f32 %v639, %v640
    %v645 = vmax.f32 %v627, %v641
    %v646 = vmax.f32 %v628, %v642
    %v647 = vmax.f32 %v629, %v643
    %v648 = vmax.f32 %v630, %v644
    %v649 = vld [vmem:[#allocation2 + $0x70] sm:$0xf]
    %v650 = vld [vmem:[#allocation2 + $0x74] sm:$0xf]
    %v651 = vld [vmem:[#allocation2 + $0x78] sm:$0xf]
    %v652 = vld [vmem:[#allocation2 + $0x7c] sm:$0xf]
    %v653 = vld [vmem:[%s1 + $0x7] sm:$0x1]
    %v654 = vunpack.c.l.bf16 %v649
    %v655 = vunpack.c.l.bf16 %v650
    %v656 = vunpack.c.l.bf16 %v651
    %v657 = vunpack.c.l.bf16 %v652
    %v658 = vperm.slane %v653, 0
    %v659 = vadd.f32 %v654, %v658
    %v660 = vadd.f32 %v655, %v658
    %v661 = vadd.f32 %v656, %v658
    %v662 = vadd.f32 %v657, %v658
    %v663 = vmax.f32 %v645, %v659
    %v664 = vmax.f32 %v646, %v660
    %v665 = vmax.f32 %v647, %v661
    %v666 = vmax.f32 %v648, %v662
    %v667 = vld [vmem:[#allocation2 + $0x80] sm:$0xf]
    %v668 = vld [vmem:[#allocation2 + $0x84] sm:$0xf]
    %v669 = vld [vmem:[#allocation2 + $0x88] sm:$0xf]
    %v670 = vld [vmem:[#allocation2 + $0x8c] sm:$0xf]
    %v671 = vld [vmem:[%s1 + $0x8] sm:$0x1]
    %v672 = vunpack.c.l.bf16 %v667
    %v673 = vunpack.c.l.bf16 %v668
    %v674 = vunpack.c.l.bf16 %v669
    %v675 = vunpack.c.l.bf16 %v670
    %v676 = vperm.slane %v671, 0
    %v677 = vadd.f32 %v672, %v676
    %v678 = vadd.f32 %v673, %v676
    %v679 = vadd.f32 %v674, %v676
    %v680 = vadd.f32 %v675, %v676
    %v681 = vmax.f32 %v663, %v677
    %v682 = vmax.f32 %v664, %v678
    %v683 = vmax.f32 %v665, %v679
    %v684 = vmax.f32 %v666, %v680
    %v685 = vadd.f32 %v518, %v681
    %v686 = vadd.f32 %v520, %v682
    %v687 = vadd.f32 %v523, %v683
    %v688 = vadd.f32 %v525, %v684
    %v689 = vmax.f32 %v685, 0.0
    %v690 = vmax.f32 %v686, 0.0
    %v691 = vmax.f32 %v687, 0.0
    %v692 = vmax.f32 %v688, 0.0
    %693 = vst [vmem:[#allocation7] sm:$0xff] %v689
    %694 = vst [vmem:[#allocation7 + $0x8] sm:$0xff] %v690
    %695 = vst [vmem:[#allocation7 + $0x10] sm:$0xff] %v691
    %696 = vst [vmem:[#allocation7 + $0x18] sm:$0xff] %v692
    // Predicated region
    $region26: #{tpu_custom_call.1} parent=1 // pred_check
      _
    $region27: #{tpu_custom_call.1} parent=1 // pred_check_branch
      %698 = sbr.rel (0) target = $region29
    $region28: #{tpu_custom_call.1} parent=1 // pred_region
      %700 = vsyncadd [#allocation4], 0
      %s701 = sshll.u32 [#allocation7], 4
      %s702 = int_to_ptr.vmem [resolvable:$true] %s701
      %s703 = sshll.u32 %s4, 4
      %s704 = int_to_ptr.hbm [resolvable:$true] %s703
      %709 = dma.vmem_to_hbm [thread:$0]  %s702, 512, %s704, [#allocation4], 128, 128, 8
    $region29: #{tpu_custom_call.1} parent=1 // pred_fallthru
      _
    // Predicated region
    $region30: #{tpu_custom_call.1} parent=1 // pred_check
      _
    $region31: #{tpu_custom_call.1} parent=1 // pred_check_branch
      %711 = sbr.rel (0) target = $region33
    $region32: #{tpu_custom_call.1} parent=1 // pred_region
      %713 = dma.done [#allocation4], 512
    $region33: #{tpu_custom_call.1} parent=1 // pred_fallthru
      _
    %714 = vsyncpa [#allocation3], 1
    %715 = vsyncpa [#allocation6], 1
    %716 = vsyncpa [#allocation4], 1

</llo_original>
